<compile_context>
chip_gen: v7x
topology: tpu7x:2x2x1
jax: 0.10.0
libtpu: 0.0.40
codegen_flags: <defaults>
</compile_context>

<pallas_src>
import re

import jax
import jax.numpy as jnp
from jax.experimental import pallas as pl
from jax.experimental.pallas import tpu as pltpu

_LANE = 128
_SUBLANE = 8


def _tpu_generation():
    """Best-effort TPU generation (4/5/6/7/...) from the device kind string."""
    try:
        kind = jax.devices()[0].device_kind.lower()
    except Exception:
        return 0
    m = re.search(r"(\d+)", kind)
    return int(m.group(1)) if m else 0


def _make_kernel(tile_rows, rows8, tiles_per_slice, num_tiles, num_slices):
    # Valid rows in the last real tile; a multiple of 8 by construction.
    last_rows = rows8 - (num_tiles - 1) * tile_rows
    ragged = last_rows != tile_rows
    has_phantom = num_slices * tiles_per_slice > num_tiles

    def _add(acc_ref, x_ref, nrows):
        # VPU-only partial reduction of the first `nrows` (static, multiple of
        # 8) rows into the resident (1, 8, 128) f32 accumulator block.
        t = x_ref[:nrows, :].astype(jnp.float32)
        partial = t.reshape(-1, _SUBLANE, _LANE).sum(axis=0)
        acc_ref[...] += partial.reshape(1, _SUBLANE, _LANE)

    def kernel(x_ref, acc_ref):
        c = pl.program_id(0)
        j = pl.program_id(1)

        # Zero this slice's resident accumulator on its first step.
        @pl.when(j == 0)
        def _():
            acc_ref[...] = jnp.zeros_like(acc_ref)

        if not ragged and not has_phantom:
            # Fast path: every tile is full and real — no branches at all.
            _add(acc_ref, x_ref, tile_rows)
        else:
            tile_idx = c * tiles_per_slice + j
            full_bound = num_tiles - 1 if ragged else num_tiles

            # Interior (full) tiles: straight add.
            @pl.when(tile_idx < full_bound)
            def _():
                _add(acc_ref, x_ref, tile_rows)

            if ragged:
                # Last real tile: static row-prefix, no mask needed.
                @pl.when(tile_idx == num_tiles - 1)
                def _():
                    _add(acc_ref, x_ref, last_rows)
            # Phantom tiles (tile_idx >= num_tiles) skip compute entirely.

    return kernel


def itself_loss(x, negation=True, *, _tile_bytes=None, _num_slices=None):
    """Pallas equivalent of Itself_loss.forward(x, negation)."""
    orig_dtype = x.dtype
    n = int(x.size)

    kernel_dtypes = (jnp.dtype(jnp.float32), jnp.dtype(jnp.bfloat16),
                     jnp.dtype(jnp.float16))
    if n == 0 or jnp.dtype(orig_dtype) not in kernel_dtypes:
        # Empty / integer / bool / f64 inputs: defer to XLA (exact semantics,
        # negligible cost for the atypical case).
        loss = jnp.sum(x)
        return -loss if negation else loss

    gen = _tpu_generation()
    if _tile_bytes is None:
        # v7x: ~4 MiB tiles (0.35us step overhead << DMA time at 3.2 TB/s);
        # v6e: ~2 MiB; v5e / unknown: ~1 MiB (16 MiB default scoped VMEM).
        _tile_bytes = (4 << 20) if gen >= 7 else (2 << 20) if gen == 6 else (1 << 20)
    if _num_slices is None:
        # 2-way core split only on 2-TensorCore v7x; v5e/v6e have a single TC.
        _num_slices = 2 if gen >= 7 else 1

    x_flat = x.reshape(-1)
    rows8 = (n // (_LANE * _SUBLANE)) * _SUBLANE     # kernel-handled rows
    n_kernel = rows8 * _LANE

    # Ragged remainder (< 8*128 + 127 elements): one tiny XLA sum keeps the
    # kernel lane-dense (128 wide) and sublane-aligned with zero masking.
    if n_kernel < n:
        tail = jnp.sum(x_flat[n_kernel:].astype(jnp.float32))
    else:
        tail = jnp.zeros((), jnp.float32)

    if rows8 == 0:
        total = tail
    else:
        x2 = x_flat[:n_kernel].reshape(rows8, _LANE)   # copy-free for n % 1024 == 0
        itemsize = x2.dtype.itemsize

        # Tile rows: multiple of 32 (packed bf16/int8 vreg friendly), ~_tile_bytes.
        target_rows = max(32, (_tile_bytes // (_LANE * itemsize)) // 32 * 32)
        tile_rows = target_rows if rows8 >= target_rows else rows8

        num_tiles = -(-rows8 // tile_rows)
        num_slices = max(1, min(int(_num_slices), num_tiles))
        tiles_per_slice = -(-num_tiles // num_slices)
        has_phantom = num_slices * tiles_per_slice > num_tiles

        kernel = _make_kernel(tile_rows, rows8, tiles_per_slice, num_tiles,
                              num_slices)

        if has_phantom:
            # Clamp phantom tiles of the ragged split to a valid block; their
            # compute is skipped inside the kernel.
            def in_index_map(c, j):
                return (jnp.minimum(c * tiles_per_slice + j, num_tiles - 1), 0)
        else:
            def in_index_map(c, j):
                return (c * tiles_per_slice + j, 0)

        in_spec = None
        if gen >= 7 and hasattr(pl, "Buffered"):
            # Deeper input pipelining on v7x (short per-tile time at 3.2 TB/s).
            try:
                in_spec = pl.BlockSpec((tile_rows, _LANE), in_index_map,
                                       pipeline_mode=pl.Buffered(3))
            except TypeError:
                in_spec = None
        if in_spec is None:
            in_spec = pl.BlockSpec((tile_rows, _LANE), in_index_map)

        out_spec = pl.BlockSpec((1, _SUBLANE, _LANE), lambda c, j: (c, 0, 0))

        cost = pl.CostEstimate(
            flops=n_kernel,
            transcendentals=0,
            bytes_accessed=n_kernel * itemsize + num_slices * _SUBLANE * _LANE * 4)

        partials = pl.pallas_call(
            kernel,
            out_shape=jax.ShapeDtypeStruct((num_slices, _SUBLANE, _LANE),
                                           jnp.float32),
            grid=(num_slices, tiles_per_slice),
            in_specs=[in_spec],
            out_specs=out_spec,
            compiler_params=pltpu.CompilerParams(
                dimension_semantics=("parallel", "arbitrary"),
                vmem_limit_bytes=32 * 1024 * 1024),
            cost_estimate=cost,
        )(x2)

        # Tiny final reduce (num_slices * 8 * 128 f32) + remainder.
        total = jnp.sum(partials) + tail

    if negation:
        total = -total
    # torch.sum keeps floating dtypes (f32->f32, bf16->bf16); accumulation is f32.
    return total.astype(orig_dtype)


if __name__ == "__main__":
    key = jax.random.PRNGKey(0)

    # Discriminator-style NCHW activation; element count is a multiple of 1024.
    x = jax.random.normal(key, (2, 4, 16, 16), dtype=jnp.float32)
    loss_neg = jax.block_until_ready(itself_loss(x, negation=True))
    loss_pos = jax.block_until_ready(itself_loss(x, negation=False))
    ref = jnp.sum(x)
    assert jnp.allclose(loss_neg, -ref, rtol=1e-5, atol=1e-3), (loss_neg, -ref)
    assert jnp.allclose(loss_pos, ref, rtol=1e-5, atol=1e-3), (loss_pos, ref)

    # Ragged element count (n % 128 != 0): lane-dense kernel slab + wrapper tail.
    x2 = jax.random.normal(jax.random.PRNGKey(1), (3, 5, 7, 11), dtype=jnp.float32)
    l2 = jax.block_until_ready(itself_loss(x2, negation=True))
    assert jnp.allclose(l2, -jnp.sum(x2), rtol=1e-5, atol=1e-3), (l2, -jnp.sum(x2))

    # Multi-tile path with a ragged last tile, a forced 2-way slice split and a
    # phantom tile (tile size forced small so the test stays small on any chip).
    x3 = jax.random.normal(jax.random.PRNGKey(2), (72, 128), dtype=jnp.float32)
    l3 = jax.block_until_ready(
        itself_loss(x3, negation=True, _tile_bytes=32 * 128 * 4, _num_slices=2))
    assert jnp.allclose(l3, -jnp.sum(x3), rtol=1e-5, atol=5e-3), (l3, -jnp.sum(x3))

    # bf16 input: in-kernel upcast, f32 accumulation, bf16 result (torch parity).
    x4 = jax.random.normal(jax.random.PRNGKey(3), (4, 8, 32), dtype=jnp.bfloat16)
    l4 = jax.block_until_ready(itself_loss(x4, negation=False))
    ref4 = jnp.sum(x4.astype(jnp.float32))
    assert jnp.allclose(l4.astype(jnp.float32), ref4, rtol=5e-2, atol=0.5), (l4, ref4)

    print("KERNEL_OK")
</pallas_src>

<mosaic_0001>
module attributes {stable_mosaic.version = 11 : i64} {
  func.func @kernel(%arg0: i32, %arg1: i32, %arg2: memref<16x128xf32, #tpu.memory_space<vmem>>, %arg3: memref<1x8x128xf32, #tpu.memory_space<vmem>>) attributes {dimension_semantics = [#tpu.dimension_semantics<parallel>, #tpu.dimension_semantics<arbitrary>], iteration_bounds = array<i64: 1, 1>, scalar_prefetch = 0 : i64, scratch_operands = 0 : i64, tpu.core_type = #tpu.core_type<tc>, window_params = [{transform_indices = @transform_0, window_bounds = array<i64: 16, 128>}, {transform_indices = @transform_1, window_bounds = array<i64: 1, 8, 128>}]} {
    %c0_i32 = arith.constant 0 : i32
    %0 = arith.cmpi eq, %arg1, %c0_i32 : i32
    %1 = arith.extui %0 : i1 to i32
    %c0_i32_0 = arith.constant 0 : i32
    %2 = arith.cmpi ne, %1, %c0_i32_0 : i32
    scf.if %2 {
      %cst_8 = arith.constant 0.000000e+00 : f32
      %10 = vector.broadcast %cst_8 : f32 to vector<1x8x128xf32>
      %c0_9 = arith.constant 0 : index
      %c0_10 = arith.constant 0 : index
      %c0_11 = arith.constant 0 : index
      %11 = vector.load %arg3[%c0_9, %c0_10, %c0_11] : memref<1x8x128xf32, #tpu.memory_space<vmem>>, vector<1x8x128xf32>
      tpu.vector_store %arg3[%c0_9, %c0_10, %c0_11], %10 {strides = array<i32>} : memref<1x8x128xf32, #tpu.memory_space<vmem>>, vector<1x8x128xf32>,
    } else {
    }
    %c0 = arith.constant 0 : index
    %c0_1 = arith.constant 0 : index
    %3 = vector.load %arg2[%c0, %c0_1] : memref<16x128xf32, #tpu.memory_space<vmem>>, vector<16x128xf32>
    %4 = vector.shape_cast %3 : vector<16x128xf32> to vector<2x8x128xf32>
    %cst = arith.constant dense<0.000000e+00> : vector<8x128xf32>
    %5 = vector.multi_reduction <add>, %4, %cst [0] : vector<2x8x128xf32> to vector<8x128xf32>
    %c0_2 = arith.constant 0 : index
    %c0_3 = arith.constant 0 : index
    %c0_4 = arith.constant 0 : index
    %6 = vector.load %arg3[%c0_2, %c0_3, %c0_4] : memref<1x8x128xf32, #tpu.memory_space<vmem>>, vector<1x8x128xf32>
    %7 = vector.shape_cast %5 : vector<8x128xf32> to vector<1x8x128xf32>
    %8 = arith.addf %6, %7 : vector<1x8x128xf32>
    %c0_5 = arith.constant 0 : index
    %c0_6 = arith.constant 0 : index
    %c0_7 = arith.constant 0 : index
    %9 = vector.load %arg3[%c0_5, %c0_6, %c0_7] : memref<1x8x128xf32, #tpu.memory_space<vmem>>, vector<1x8x128xf32>
    tpu.vector_store %arg3[%c0_5, %c0_6, %c0_7], %8 {strides = array<i32>} : memref<1x8x128xf32, #tpu.memory_space<vmem>>, vector<1x8x128xf32>,
    return
  }
  func.func @transform_0(%arg0: i32, %arg1: i32) -> (i32, i32) {
    %c1_i32 = arith.constant 1 : i32
    %0 = arith.muli %arg0, %c1_i32 : i32
    %1 = arith.addi %0, %arg1 : i32
    %c0_i32 = arith.constant 0 : i32
    %c0_i32_0 = arith.constant 0 : i32
    return %1, %c0_i32 : i32, i32
  }
  func.func @transform_1(%arg0: i32, %arg1: i32) -> (i32, i32, i32) {
    %c0_i32 = arith.constant 0 : i32
    %c0_i32_0 = arith.constant 0 : i32
    %c0_i32_1 = arith.constant 0 : i32
    return %arg0, %c0_i32, %c0_i32_0 : i32, i32, i32
  }
}

</mosaic_0001>

<llo_original>
// kernel: tpu_custom_call.1
$region0: #{tpu_custom_call.1}
  #allocation0 [shape = 'u32[]', space=smem, size = 0x4, offset = 0x4, fixed_abs, tag = 'smem constant byte address 0x4 - core index']
  #allocation1 [shape = 'u32[144,128]{1,0:T(1,128)}', space=vmem, size = 0x12000, scoped, tag = 'internal scratch']
  %s0 = inlined_call_operand.hbm [shape: f32[16,128], index: 0, kind: input, shape index: {}]
  %s1 = inlined_call_operand.hbm [shape: f32[1,8,128], index: 1, kind: output, shape index: {}]
  %s2 = sld [smem:[#allocation0]]
  $region22: #{tpu_custom_call.1} parent=0
    _
  %s4 = ssub.s32 1, %s2
  %s5 = scalar_select 0, %s4, %s2
  $region1: #{tpu_custom_call.1} parent=0
    #allocation2 [shape = 'u8[8192]{0}', space=vmem, size = 0x2000, scoped, tag = 'input window, operand 0, single buffered']
    #allocation3 [shape = 's32[1]{0}', space=sflag, size = 0x4, scoped, tag = 'scoped memory for tpu_custom_call.1']
    #allocation4 [shape = 's32[1]{0}', space=sflag, size = 0x4, scoped, tag = 'scoped memory for tpu_custom_call.1']
    #allocation5 [shape = 'u8[4096]{0}', space=vmem, size = 0x1000, scoped, tag = 'output window, operand 0, single buffered']
    %6 = vsyncpa [#allocation3], 0
    %7 = vsyncpa [#allocation4], 0
    // Predicated region
    $region2: #{tpu_custom_call.1} parent=1 // pred_check
      _
    $region3: #{tpu_custom_call.1} parent=1 // pred_check_branch
      %9 = sbr.rel (0) target = $region5
    $region4: #{tpu_custom_call.1} parent=1 // pred_region
      %s10 = sadd.s32 0, 0
      %s11 = smul.u32 2, %s10
      %s13 = ssub.s32 256, 256
      %14 = vsyncadd [#allocation3], %s13
      %s15 = smul.addr %s11, 128
      %s16 = scalar_lea.hbm %s0, %s15
      %s17 = sshll.u32 [#allocation2], 4
      %s18 = int_to_ptr.vmem [resolvable:$true] %s17
      %23 = dma.hbm_to_vmem [thread:$0]  %s16, 256, %s18, [#allocation3], 128, 128, 8
    $region5: #{tpu_custom_call.1} parent=1 // pred_fallthru
      _
    // Predicated region
    $region6: #{tpu_custom_call.1} parent=1 // pred_check
      _
    $region7: #{tpu_custom_call.1} parent=1 // pred_check_branch
      %25 = sbr.rel (0) target = $region9
    $region8: #{tpu_custom_call.1} parent=1 // pred_region
      %26 = dma.done [#allocation3], 256
    $region9: #{tpu_custom_call.1} parent=1 // pred_fallthru
      _
    %s27 = sadd.s32 0, 0
    %s28 = smul.u32 2, %s27
    %p29 = scmp.eq.s32.totalorder 0, 0
    // Predicated region
    $region10: #{tpu_custom_call.1} parent=1 // pred_check
      %p30 = pneg %p29
    $region11: #{tpu_custom_call.1} parent=1 // pred_check_branch
      %32 = sbr.rel (%p30) target = $region13
    $region12: #{tpu_custom_call.1} parent=1 // pred_region
      %33 = vst [vmem:[#allocation5] sm:$0xff] 0.0
    $region13: #{tpu_custom_call.1} parent=1 // pred_fallthru
      _
    %v34 = vld [vmem:[#allocation2] sm:$0xff]
    %v35 = vld [vmem:[#allocation2 + $0x8] sm:$0xff]
    %v36 = vadd.f32 %v34, %v35
    %v37 = vld [vmem:[#allocation5] sm:$0xff]
    %v38 = vadd.f32 %v37, %v36
    %39 = vst [vmem:[#allocation5] sm:$0xff] %v38
    // Predicated region
    $region14: #{tpu_custom_call.1} parent=1 // pred_check
      _
    $region15: #{tpu_custom_call.1} parent=1 // pred_check_branch
      %41 = sbr.rel (0) target = $region17
    $region16: #{tpu_custom_call.1} parent=1 // pred_region
      %s43 = ssub.s32 128, 128
      %44 = vsyncadd [#allocation4], %s43
      %s46 = sshll.u32 [#allocation5], 4
      %s47 = int_to_ptr.vmem [resolvable:$true] %s46
      %49 = dma.vmem_to_hbm [thread:$0]  %s47, 128, %s1, [#allocation4]
    $region17: #{tpu_custom_call.1} parent=1 // pred_fallthru
      _
    // Predicated region
    $region18: #{tpu_custom_call.1} parent=1 // pred_check
      _
    $region19: #{tpu_custom_call.1} parent=1 // pred_check_branch
      %51 = sbr.rel (0) target = $region21
    $region20: #{tpu_custom_call.1} parent=1 // pred_region
      %52 = dma.done [#allocation4], 128
    $region21: #{tpu_custom_call.1} parent=1 // pred_fallthru
      _
    %53 = vsyncpa [#allocation3], 1
    %54 = vsyncpa [#allocation4], 1

</llo_original>
